<compile_context>
chip_gen: v7x
topology: tpu7x:2x2x1
jax: 0.10.0
libtpu: 0.0.40
codegen_flags: <defaults>
</compile_context>

<pallas_src>
import functools

import jax
import jax.numpy as jnp
from jax import lax
from jax.experimental import pallas as pl
from jax.experimental.pallas import tpu as pltpu

_SQRT1_2 = 0.7071067811865476


def _erf(x):
    # Abramowitz & Stegun 7.1.26 (|err| < 1.5e-7), ops guaranteed to lower.
    a1, a2, a3, a4, a5 = (0.254829592, -0.284496736, 1.421413741,
                          -1.453152027, 1.061405429)
    p = 0.3275911
    sgn = jnp.where(x >= 0.0, 1.0, -1.0)
    ax = jnp.abs(x)
    t = 1.0 / (1.0 + p * ax)
    poly = ((((a5 * t + a4) * t + a3) * t + a2) * t + a1) * t
    return sgn * (1.0 - poly * jnp.exp(-ax * ax))


def _apply_act(y, act):
    if act == "none":
        return y
    if act == "relu":
        return jnp.maximum(y, 0.0)
    if act == "gelu":                      # nn.GELU() = exact erf-based GELU
        return 0.5 * y * (1.0 + _erf(y * _SQRT1_2))
    raise ValueError(act)


def _conv1d_br_kernel(x_ref, w_ref, b_ref, o_ref, *, act):
    """One grid step: y[b, :, n0:n0+TN] = act(W_folded @ x[b, :, n0:n0+TN] + b_folded).

    x_ref: [1, C_in, TN]   (f32, cast to bf16 for the MXU)
    w_ref: [C_out, C_in]   (bf16, BN-folded in the wrapper)
    b_ref: [C_out, 1]      (f32, conv-bias + BN fold)
    o_ref: [1, C_out, TN]  (f32, lane-dense: last dim is the spatial axis)
    """
    x = x_ref[0].astype(jnp.bfloat16)
    w = w_ref[...].astype(jnp.bfloat16)
    y = jnp.dot(w, x, preferred_element_type=jnp.float32)   # [C_out, TN], f32 acc
    y = y + b_ref[...]                                       # broadcast over lanes
    o_ref[0] = _apply_act(y, act).astype(o_ref.dtype)


def conv1d_br(x, conv_w, conv_b, bn_gamma, bn_beta, bn_mean, bn_var,
              *, activation="relu", eps=1e-5, tile_n=512):
    """Conv1DBR forward. x: [B, C_in, N] (NCW) -> [B, C_out, N]."""
    B, C_in, N = x.shape
    C_out = conv_w.shape[0]

    # Fold conv bias + eval-mode BatchNorm into weight/bias at trace time.
    scale = bn_gamma * lax.rsqrt(bn_var + eps)                       # [C_out]
    w_folded = (conv_w * scale[:, None]).astype(jnp.bfloat16)        # [C_out, C_in]
    b_folded = (scale * (conv_b - bn_mean) + bn_beta).astype(
        jnp.float32).reshape(C_out, 1)

    # Largest lane-dense spatial tile; fall back to one full-width block if
    # N is not a multiple of the tile (full-dim blocks are always legal).
    tn = N if N <= tile_n else tile_n
    if N % tn != 0:
        tn = N
    grid = (B, N // tn)

    return pl.pallas_call(
        functools.partial(_conv1d_br_kernel, act=activation),
        out_shape=jax.ShapeDtypeStruct((B, C_out, N), jnp.float32),
        grid=grid,
        in_specs=[
            pl.BlockSpec((1, C_in, tn), lambda b, n: (b, 0, n)),
            pl.BlockSpec((C_out, C_in), lambda b, n: (0, 0)),
            pl.BlockSpec((C_out, 1), lambda b, n: (0, 0)),
        ],
        out_specs=pl.BlockSpec((1, C_out, tn), lambda b, n: (b, 0, n)),
        compiler_params=pltpu.CompilerParams(
            dimension_semantics=("parallel", "parallel")),
    )(x, w_folded, b_folded)


def conv1d_br_reference(x, conv_w, conv_b, bn_gamma, bn_beta, bn_mean, bn_var,
                        *, activation="relu", eps=1e-5):
    """Pure-JAX f32 reference (conv1x1 -> eval BN -> act), PyTorch semantics."""
    y = jnp.einsum("oc,bcn->bon", conv_w, x) + conv_b[None, :, None]
    y = ((y - bn_mean[None, :, None])
         * lax.rsqrt(bn_var + eps)[None, :, None]
         * bn_gamma[None, :, None]
         + bn_beta[None, :, None])
    if activation == "relu":
        y = jnp.maximum(y, 0.0)
    elif activation == "gelu":
        y = jax.nn.gelu(y, approximate=False)
    return y


if __name__ == "__main__":
    B, C_IN, C_OUT, N = 2, 16, 32, 256

    key = jax.random.PRNGKey(0)
    kx, kw, kb, kg, kbe, km, kv = jax.random.split(key, 7)
    x = jax.random.normal(kx, (B, C_IN, N), jnp.float32)
    conv_w = jax.random.normal(kw, (C_OUT, C_IN), jnp.float32) / jnp.sqrt(C_IN)
    conv_b = 0.1 * jax.random.normal(kb, (C_OUT,), jnp.float32)
    bn_gamma = 1.0 + 0.1 * jax.random.normal(kg, (C_OUT,), jnp.float32)
    bn_beta = 0.05 * jax.random.normal(kbe, (C_OUT,), jnp.float32)
    bn_mean = 0.1 * jax.random.normal(km, (C_OUT,), jnp.float32)
    bn_var = 1.0 + 0.1 * jnp.abs(jax.random.normal(kv, (C_OUT,), jnp.float32))

    fwd = jax.jit(functools.partial(conv1d_br, activation="relu"))
    out = jax.block_until_ready(
        fwd(x, conv_w, conv_b, bn_gamma, bn_beta, bn_mean, bn_var))

    assert out.shape == (B, C_OUT, N), out.shape
    assert bool(jnp.all(jnp.isfinite(out)))

    ref = conv1d_br_reference(x, conv_w, conv_b, bn_gamma, bn_beta,
                              bn_mean, bn_var, activation="relu")
    max_err = float(jnp.max(jnp.abs(out - ref)))
    # bf16 MXU operands with f32 accumulation: expected |err| << 5e-2 here.
    assert max_err < 5e-2, f"max abs err vs f32 reference: {max_err}"

    print("KERNEL_OK")
</pallas_src>

<mosaic_0001>
module attributes {stable_mosaic.version = 11 : i64} {
  func.func @_conv1d_br_kernel(%arg0: i32, %arg1: i32, %arg2: memref<1x16x256xf32, #tpu.memory_space<vmem>>, %arg3: memref<32x16xbf16, #tpu.memory_space<vmem>>, %arg4: memref<32x1xf32, #tpu.memory_space<vmem>>, %arg5: memref<1x32x256xf32, #tpu.memory_space<vmem>>) attributes {dimension_semantics = [#tpu.dimension_semantics<parallel>, #tpu.dimension_semantics<parallel>], iteration_bounds = array<i64: 2, 1>, scalar_prefetch = 0 : i64, scratch_operands = 0 : i64, tpu.core_type = #tpu.core_type<tc>, window_params = [{transform_indices = @transform_0, window_bounds = array<i64: 1, 16, 256>}, {pipeline_mode = #tpu.pipeline_mode<synchronous>, transform_indices = @transform_1, window_bounds = array<i64: 32, 16>}, {pipeline_mode = #tpu.pipeline_mode<synchronous>, transform_indices = @transform_2, window_bounds = array<i64: 32, 1>}, {transform_indices = @transform_3, window_bounds = array<i64: 1, 32, 256>}]} {
    %c0 = arith.constant 0 : index
    %c0_0 = arith.constant 0 : index
    %c0_1 = arith.constant 0 : index
    %0 = vector.load %arg2[%c0, %c0_0, %c0_1] : memref<1x16x256xf32, #tpu.memory_space<vmem>>, vector<1x16x256xf32>
    %1 = vector.shape_cast %0 : vector<1x16x256xf32> to vector<16x256xf32>
    %2 = arith.truncf %1 : vector<16x256xf32> to vector<16x256xbf16>
    %c0_2 = arith.constant 0 : index
    %c0_3 = arith.constant 0 : index
    %3 = vector.load %arg3[%c0_2, %c0_3] : memref<32x16xbf16, #tpu.memory_space<vmem>>, vector<32x16xbf16>
    %cst = arith.constant dense<0.000000e+00> : vector<32x256xf32>
    %4 = tpu.matmul %3, %2, %cst {dimension_numbers = #tpu.dot_dimension_numbers<[1], [0], [0], [1], [0, 0, 1, 1], [], []>} : vector<32x16xbf16>, vector<16x256xbf16>, vector<32x256xf32> -> vector<32x256xf32>
    %c0_4 = arith.constant 0 : index
    %c0_5 = arith.constant 0 : index
    %5 = vector.load %arg4[%c0_4, %c0_5] : memref<32x1xf32, #tpu.memory_space<vmem>>, vector<32x1xf32>
    %6 = vector.broadcast %5 : vector<32x1xf32> to vector<32x256xf32>
    %7 = arith.addf %4, %6 : vector<32x256xf32>
    %cst_6 = arith.constant 0.000000e+00 : f32
    %8 = vector.broadcast %cst_6 : f32 to vector<32x256xf32>
    %9 = arith.maximumf %7, %8 : vector<32x256xf32>
    %c0_7 = arith.constant 0 : index
    %c0_8 = arith.constant 0 : index
    %c0_9 = arith.constant 0 : index
    %10 = vector.load %arg5[%c0_7, %c0_8, %c0_9] : memref<1x32x256xf32, #tpu.memory_space<vmem>>, vector<1x32x256xf32>
    %11 = vector.shape_cast %10 : vector<1x32x256xf32> to vector<32x256xf32>
    %12 = vector.shape_cast %9 : vector<32x256xf32> to vector<1x32x256xf32>
    tpu.vector_store %arg5[%c0_7, %c0_8, %c0_9], %12 {strides = array<i32>} : memref<1x32x256xf32, #tpu.memory_space<vmem>>, vector<1x32x256xf32>,
    return
  }
  func.func @transform_0(%arg0: i32, %arg1: i32) -> (i32, i32, i32) {
    %c0_i32 = arith.constant 0 : i32
    %c0_i32_0 = arith.constant 0 : i32
    return %arg0, %c0_i32, %arg1 : i32, i32, i32
  }
  func.func @transform_1(%arg0: i32, %arg1: i32) -> (i32, i32) {
    %c0_i32 = arith.constant 0 : i32
    %c0_i32_0 = arith.constant 0 : i32
    %c0_i32_1 = arith.constant 0 : i32
    return %c0_i32, %c0_i32_0 : i32, i32
  }
  func.func @transform_2(%arg0: i32, %arg1: i32) -> (i32, i32) {
    %c0_i32 = arith.constant 0 : i32
    %c0_i32_0 = arith.constant 0 : i32
    %c0_i32_1 = arith.constant 0 : i32
    return %c0_i32, %c0_i32_0 : i32, i32
  }
  func.func @transform_3(%arg0: i32, %arg1: i32) -> (i32, i32, i32) {
    %c0_i32 = arith.constant 0 : i32
    %c0_i32_0 = arith.constant 0 : i32
    return %arg0, %c0_i32, %arg1 : i32, i32, i32
  }
}

</mosaic_0001>

<llo_original>
// kernel: conv1d_br.1
$region0: #{conv1d_br.1}
  #allocation0 [shape = 'u32[]', space=smem, size = 0x4, offset = 0x4, fixed_abs, tag = 'smem constant byte address 0x4 - core index']
  #allocation1 [shape = 'u32[144,128]{1,0:T(1,128)}', space=vmem, size = 0x12000, scoped, tag = 'internal scratch']
  %s0 = inlined_call_operand.vmem [shape: f32[2,16,256], index: 0, kind: input, shape index: {}]
  %s1 = inlined_call_operand.vmem [shape: bf16[32,16], index: 1, kind: input, shape index: {}]
  %s2 = inlined_call_operand.vmem [shape: f32[32,1], index: 2, kind: input, shape index: {}]
  %s3 = inlined_call_operand.hbm [shape: f32[2,32,256], index: 3, kind: output, shape index: {}]
  %s4 = sld [smem:[#allocation0]]
  $region45: #{conv1d_br.1} parent=0
    _
  %s6 = ssub.s32 1, %s4
  %s7 = scalar_select 0, %s6, %s4
  $region1: #{conv1d_br.1} parent=0
    #allocation2 [shape = 'u8[65536]{0}', space=vmem, size = 0x10000, scoped, tag = 'output window, operand 0']
    #allocation3 [shape = 's32[2]{0}', space=sflag, size = 0x8, scoped, tag = 'scoped memory for conv1d_br.1']
    %8 = vsyncpa [#allocation3], 0
    %s9 = scalar_lea.sflag [#allocation3], 1
    %10 = vsyncpa %s9, 0
    loop: start=0, step=1, limit=4
    $region2: #{conv1d_br.1} parent=1 // loop_pre_header
      _
    $region3: #{conv1d_br.1} parent=1 // loop_header
      %s12 = sphi 0, %s16
      %p13 = scmp.ge.s32.totalorder %s12, 4
      %s19 = sphi 0, %s31
      %s20 = sphi 0, %s27
      %s21 = sphi 0, %s19
      %s22 = sphi 0, %s20
      %s23 = sphi 0, %s21
      %s24 = sphi 0, %s22
      %s36 = sphi 0, %s38
      %s39 = sphi 0, %s36
      %s40 = sphi 0, %s39
      %s56 = sphi 0, %s40
      %s60 = sphi 0, %s60
      %s62 = sphi 0, %s60
      %s63 = sphi 0, %s62
      %s77 = sphi 0, %s63
      %s81 = sphi 0, %s81
      %s83 = sphi 0, %s81
      %s84 = sphi 0, %s83
      %s98 = sphi 0, %s84
      %s106 = sphi 0, %s108
      %s109 = sphi 0, %s106
      %s110 = sphi 0, %s109
      %s126 = sphi 0, %s110
    $region4: #{conv1d_br.1} parent=1 // loop_header_branch
      %15 = sbr.rel (%p13) target = $region8
    $region5: #{conv1d_br.1} parent=1 // loop_body
      %s17 = ssub.s32 %s12, 1
      %s18 = ssub.s32 %s12, 2
      %s25 = sadd.s32 1, %s20
      %p26 = scmp.ge.s32.totalorder %s25, 1
      %s27 = scalar_select %p26, 0, %s25
      %s28 = sadd.s32 1, %s19
      %s29 = scalar_select %p26, %s28, %s19
      %p30 = scmp.ge.s32.totalorder %s29, 2
      %s31 = scalar_select %p30, 0, %s29
      %s32 = ssub.s32 %s19, %s31
      %s33 = ssub.s32 %s20, %s27
      %s34 = sor.u32 %s32, %s33
      %p35 = scmp.eq.s32.totalorder %s34, 0
      %s37 = sadd.s32 %s36, 1
      %s38 = scalar_select %p35, %s36, %s37
      %p41 = pneg %p35
      %p42 = scmp.eq.s32.totalorder %s12, 1
      %p43 = por %p41, %p42
      %p44 = scmp.ne.s32.totalorder %s36, %s39
      %p45 = scmp.eq.s32.totalorder %s12, 0
      %p46 = por %p44, %p45
      %p47 = scmp.ne.s32.totalorder %s36, %s39
      %p48 = scmp.eq.s32.totalorder %s17, 1
      %p49 = por %p47, %p48
      %p50 = scmp.ne.s32.totalorder %s39, %s40
      %p51 = scmp.eq.s32.totalorder %s17, 0
      %p52 = por %p50, %p51
      %p53 = scmp.ne.s32.totalorder %s39, %s40
      %p54 = scmp.eq.s32.totalorder %s18, 1
      %p55 = por %p53, %p54
      %p57 = scmp.ne.s32.totalorder %s40, %s56
      %p58 = scmp.eq.s32.totalorder %s18, 0
      %p59 = por %p57, %p58
      %s61 = sadd.s32 %s60, 1
      %p64 = scmp.eq.s32.totalorder %s12, 1
      %p65 = scmp.ne.s32.totalorder %s60, %s62
      %p66 = scmp.eq.s32.totalorder %s12, 0
      %p67 = por %p65, %p66
      %p68 = scmp.ne.s32.totalorder %s60, %s62
      %p69 = scmp.eq.s32.totalorder %s17, 1
      %p70 = por %p68, %p69
      %p71 = scmp.ne.s32.totalorder %s62, %s63
      %p72 = scmp.eq.s32.totalorder %s17, 0
      %p73 = por %p71, %p72
      %p74 = scmp.ne.s32.totalorder %s62, %s63
      %p75 = scmp.eq.s32.totalorder %s18, 1
      %p76 = por %p74, %p75
      %p78 = scmp.ne.s32.totalorder %s63, %s77
      %p79 = scmp.eq.s32.totalorder %s18, 0
      %p80 = por %p78, %p79
      %s82 = sadd.s32 %s81, 1
      %p85 = scmp.eq.s32.totalorder %s12, 1
      %p86 = scmp.ne.s32.totalorder %s81, %s83
      %p87 = scmp.eq.s32.totalorder %s12, 0
      %p88 = por %p86, %p87
      %p89 = scmp.ne.s32.totalorder %s81, %s83
      %p90 = scmp.eq.s32.totalorder %s17, 1
      %p91 = por %p89, %p90
      %p92 = scmp.ne.s32.totalorder %s83, %s84
      %p93 = scmp.eq.s32.totalorder %s17, 0
      %p94 = por %p92, %p93
      %p95 = scmp.ne.s32.totalorder %s83, %s84
      %p96 = scmp.eq.s32.totalorder %s18, 1
      %p97 = por %p95, %p96
      %p99 = scmp.ne.s32.totalorder %s84, %s98
      %p100 = scmp.eq.s32.totalorder %s18, 0
      %p101 = por %p99, %p100
      %s102 = ssub.s32 %s19, %s31
      %s103 = ssub.s32 %s20, %s27
      %s104 = sor.u32 %s102, %s103
      %p105 = scmp.eq.s32.totalorder %s104, 0
      %s107 = sadd.s32 %s106, 1
      %s108 = scalar_select %p105, %s106, %s107
      %p111 = pneg %p105
      %p112 = scmp.eq.s32.totalorder %s12, 1
      %p113 = por %p111, %p112
      %p114 = scmp.ne.s32.totalorder %s106, %s109
      %p115 = scmp.eq.s32.totalorder %s12, 0
      %p116 = por %p114, %p115
      %p117 = scmp.ne.s32.totalorder %s106, %s109
      %p118 = scmp.eq.s32.totalorder %s17, 1
      %p119 = por %p117, %p118
      %p120 = scmp.ne.s32.totalorder %s109, %s110
      %p121 = scmp.eq.s32.totalorder %s17, 0
      %p122 = por %p120, %p121
      %p123 = scmp.ne.s32.totalorder %s109, %s110
      %p124 = scmp.eq.s32.totalorder %s18, 1
      %p125 = por %p123, %p124
      %p127 = scmp.ne.s32.totalorder %s110, %s126
      %p128 = scmp.eq.s32.totalorder %s18, 0
      %p129 = por %p127, %p128
      %p130 = scmp.le.s32.totalorder 1, %s12
      %p131 = scmp.lt.s32.totalorder %s12, 3
      %p132 = pnand %p130, %p131
      %p133 = pneg %p132
      // Predicated region
      $region9: #{conv1d_br.1} parent=5 // pred_check
        _
      $region10: #{conv1d_br.1} parent=5 // pred_check_branch
        %135 = sbr.rel (%p132) target = $region12
      $region11: #{conv1d_br.1} parent=5 // pred_region
        %s136 = ssub.s32 %s12, 1
        // Predicated region
        $region13: #{conv1d_br.1} parent=11 // pred_check
          %p137 = pneg %p73
        $region14: #{conv1d_br.1} parent=11 // pred_check_branch
          %139 = sbr.rel (%p137) target = $region16
        $region15: #{conv1d_br.1} parent=11 // pred_region
          _
        $region16: #{conv1d_br.1} parent=11 // pred_fallthru
          _
        // Predicated region
        $region17: #{conv1d_br.1} parent=11 // pred_check
          %p140 = pneg %p94
        $region18: #{conv1d_br.1} parent=11 // pred_check_branch
          %142 = sbr.rel (%p140) target = $region20
        $region19: #{conv1d_br.1} parent=11 // pred_region
          _
        $region20: #{conv1d_br.1} parent=11 // pred_fallthru
          _
      $region12: #{conv1d_br.1} parent=5 // pred_fallthru
        _
      %p143 = scmp.lt.s32.totalorder %s12, 2
      // Predicated region
      $region21: #{conv1d_br.1} parent=5 // pred_check
        %p144 = pneg %p143
      $region22: #{conv1d_br.1} parent=5 // pred_check_branch
        %146 = sbr.rel (%p144) target = $region24
      $region23: #{conv1d_br.1} parent=5 // pred_region
        // Predicated region
        $region25: #{conv1d_br.1} parent=23 // pred_check
          %p147 = pneg %p46
        $region26: #{conv1d_br.1} parent=23 // pred_check_branch
          %149 = sbr.rel (%p147) target = $region28
        $region27: #{conv1d_br.1} parent=23 // pred_region
          %s150 = smul.u32 2, %s20
          %p151 = scmp.lt.s32.totalorder %s19, 1
          %s152 = scalar_select %p151, %s19, 1
          %p153 = scmp.lt.s32.totalorder %s150, 1
          %s154 = scalar_select %p153, %s150, 1
          %s155 = smul.addr %s152, 4
          %s156 = sadd.s32 %s154, %s155
          %s157 = smul.addr %s156, 8
          %s158 = scalar_lea.vmem %s0, %s157
          %s159 = smul.u32 2, %s20
        $region28: #{conv1d_br.1} parent=23 // pred_fallthru
          _
      $region24: #{conv1d_br.1} parent=5 // pred_fallthru
        _
      %p160 = scmp.le.s32.totalorder 1, %s12
      %p161 = scmp.lt.s32.totalorder %s12, 3
      %p162 = pnand %p160, %p161
      %p163 = pneg %p162
      // Predicated region
      $region29: #{conv1d_br.1} parent=5 // pred_check
        _
      $region30: #{conv1d_br.1} parent=5 // pred_check_branch
        %165 = sbr.rel (%p162) target = $region32
      $region31: #{conv1d_br.1} parent=5 // pred_region
        %s166 = ssub.s32 %s12, 1
        %s167 = smul.u32 2, %s22
        %p168 = scmp.lt.s32.totalorder %s21, 1
        %s169 = scalar_select %p168, %s21, 1
        %p170 = scmp.lt.s32.totalorder %s167, 1
        %s171 = scalar_select %p170, %s167, 1
        %s172 = smul.addr %s169, 4
        %s173 = sadd.s32 %s171, %s172
        %s174 = smul.addr %s173, 8
        %s175 = scalar_lea.vmem %s0, %s174
        %p176 = pneg %p52
        %p177 = pneg %p49
        %p178 = pneg %p73
        %p179 = pneg %p70
        %p180 = pneg %p94
        %p181 = pneg %p91
        %p182 = pneg %p122
        %p183 = pneg %p119
        %s184 = sand.u32 %s109, 1
        %s185 = scalar_lea.sflag [#allocation3], %s184
        %s186 = sand.u32 %s109, 1
        %s187 = smul.addr %s186, 64
        %s188 = scalar_lea.vmem [#allocation2], %s187
        %s189 = smul.u32 2, %s22
        %p190 = scmp.lt.s32.totalorder %s21, 1
        %s191 = scalar_select %p190, %s21, 1
        %p192 = scmp.lt.s32.totalorder %s189, 1
        %s193 = scalar_select %p192, %s189, 1
        %s194 = smul.addr %s191, 4
        %s195 = sadd.s32 %s193, %s194
        %s196 = smul.addr %s195, 8
        %s197 = scalar_lea.vmem %s0, %s196
        %s198 = smul.u32 2, %s22
        %s199 = smul.u32 2, %s22
        %v201 = vld [vmem:[%s197] sm:$0xff]
        %v202 = vld [vmem:[%s197 + $0x8] sm:$0xff]
        %v203 = vld [vmem:[%s197 + $0x10] sm:$0xff]
        %v204 = vld [vmem:[%s197 + $0x18] sm:$0xff]
        %v205 = vpack.c.bf16 %v203, %v201
        %v206 = vpack.c.bf16 %v204, %v202
        %v207 = vld [vmem:[%s1] sm:$0xf]
        %v208 = vld [vmem:[%s1 + $0x4] sm:$0xf]
        %v209 = vld [vmem:[%s1 + $0x8] sm:$0xf]
        %v210 = vld [vmem:[%s1 + $0xc] sm:$0xf]
        %v211 = vld [vmem:[%s2] sm:$0xff]
        %v212 = vld [vmem:[%s2 + $0x8] sm:$0xff]
        %v213 = vld [vmem:[%s2 + $0x10] sm:$0xff]
        %v214 = vld [vmem:[%s2 + $0x18] sm:$0xff]
        %216 = vset.pattern.permute.xlu0 0
        %217 = vperm.xlu0 %216, %v211
        %v218 = vpop.permute.xlu0 %217
        %221 = vset.pattern.permute.xlu0 0
        %222 = vperm.xlu0 %221, %v212
        %v223 = vpop.permute.xlu0 %222
        %226 = vset.pattern.permute.xlu0 0
        %227 = vperm.xlu0 %226, %v213
        %v228 = vpop.permute.xlu0 %227
        %231 = vset.pattern.permute.xlu0 0
        %232 = vperm.xlu0 %231, %v214
        %v233 = vpop.permute.xlu0 %232
        %v239 = vunpack.c.l.b16 %v207
        %v240 = vunpack.c.l.b16 %v208
        %v241 = vunpack.c.l.b16 %v209
        %v242 = vunpack.c.l.b16 %v210
        %v243 = vpack.c.b16 %v240, %v239
        %v244 = vpack.c.b16 %v242, %v241
        %vm245 = vcmask 130048
        %v247 = vsel %vm245, %v243, 0
        %v250 = vsel %vm245, %v244, 0
        %252 = vmatprep.subr.bf16.mxu0 %v206
        %253 = vmatpush1.bf16.msra.mxu0 %v205
        %254 = vmatprep.subr.bf16.mxu0 0
        %255 = vmatpush1.bf16.msra.mxu0 0
        %256 = vmatprep.subr.bf16.mxu0 0
        %257 = vmatpush1.bf16.msra.mxu0 0
        %258 = vmatprep.subr.bf16.mxu0 0
        %259 = vmatpush1.bf16.msra.mxu0 0
        %260 = vmatprep.subr.bf16.mxu0 0
        %261 = vmatpush1.bf16.msra.mxu0 0
        %262 = vmatprep.subr.bf16.mxu0 0
        %263 = vmatpush1.bf16.msra.mxu0 0
        %264 = vmatprep.subr.bf16.mxu0 0
        %265 = vmatpush1.bf16.msra.mxu0 0
        %266 = vmatprep.subr.bf16.mxu0 0
        %267 = vmatpush1.bf16.msra.mxu0 0
        %268 = vmatprep.subr.bf16.mxu0 0
        %269 = vmatpush1.bf16.msra.mxu0 0
        %270 = vmatprep.subr.bf16.mxu0 0
        %271 = vmatpush1.bf16.msra.mxu0 0
        %272 = vmatprep.subr.bf16.mxu0 0
        %273 = vmatpush1.bf16.msra.mxu0 0
        %274 = vmatprep.subr.bf16.mxu0 0
        %275 = vmatpush1.bf16.msra.mxu0 0
        %276 = vmatprep.subr.bf16.mxu0 0
        %277 = vmatpush1.bf16.msra.mxu0 0
        %278 = vmatprep.subr.bf16.mxu0 0
        %279 = vmatpush1.bf16.msra.mxu0 0
        %280 = vmatprep.subr.bf16.mxu0 0
        %281 = vmatpush1.bf16.msra.mxu0 0
        %282 = vmatprep.subr.bf16.mxu0 0
        %283 = vmatpush1.bf16.msra.mxu0 0
        %284 = vmatprep.mubr.bf16.mxu0 0
        %285 = vmatmul.mubr.bf16.gmra.mrb[0].mxu0 %v247
        %v286 = vpop.f32.mrb[0].mxu0
        %v287 = vadd.f32 %v218, %v286
        %v288 = vpop.f32.mrb[0].mxu0
        %v289 = vadd.f32 %v218, %v288
        %v290 = vpop.f32.mrb[0].mxu0
        %v291 = vadd.f32 %v223, %v290
        %v292 = vpop.f32.mrb[0].mxu0
        %v293 = vadd.f32 %v223, %v292
        %294 = vmatprep.mubr.bf16.mxu0 0
        %295 = vmatmul.mubr.bf16.gmra.mrb[0].mxu0 %v250
        %v296 = vpop.f32.mrb[0].mxu0
        %v297 = vadd.f32 %v228, %v296
        %v298 = vpop.f32.mrb[0].mxu0
        %v299 = vadd.f32 %v228, %v298
        %v300 = vpop.f32.mrb[0].mxu0
        %v301 = vadd.f32 %v233, %v300
        %v302 = vpop.f32.mrb[0].mxu0
        %v303 = vadd.f32 %v233, %v302
        %304 = vdwg.mxu0
        %v305 = vmax.f32 %v287, 0.0
        %v306 = vmax.f32 %v289, 0.0
        %v307 = vmax.f32 %v291, 0.0
        %v308 = vmax.f32 %v293, 0.0
        %v309 = vmax.f32 %v297, 0.0
        %v310 = vmax.f32 %v299, 0.0
        %v311 = vmax.f32 %v301, 0.0
        %v312 = vmax.f32 %v303, 0.0
        %313 = vst [vmem:[%s188] sm:$0xff] %v305
        %314 = vst [vmem:[%s188 + $0x8] sm:$0xff] %v306
        %315 = vst [vmem:[%s188 + $0x10] sm:$0xff] %v307
        %316 = vst [vmem:[%s188 + $0x18] sm:$0xff] %v308
        %317 = vst [vmem:[%s188 + $0x20] sm:$0xff] %v309
        %318 = vst [vmem:[%s188 + $0x28] sm:$0xff] %v310
        %319 = vst [vmem:[%s188 + $0x30] sm:$0xff] %v311
        %320 = vst [vmem:[%s188 + $0x38] sm:$0xff] %v312
        %s321 = sand.u32 %s109, 1
        %s322 = scalar_lea.sflag [#allocation3], %s321
        %s323 = sand.u32 %s109, 1
        %s324 = smul.addr %s323, 64
        %s325 = scalar_lea.vmem [#allocation2], %s324
        // Predicated region
        $region33: #{conv1d_br.1} parent=31 // pred_check
          %p326 = pneg %p119
        $region34: #{conv1d_br.1} parent=31 // pred_check_branch
          %328 = sbr.rel (%p326) target = $region36
        $region35: #{conv1d_br.1} parent=31 // pred_region
          %s329 = smul.u32 2, %s22
          %s331 = ssub.s32 1024, 1024
          %332 = vsyncadd %s322, %s331
          %s333 = smul.addr %s21, 8
          %s334 = sadd.s32 %s329, %s333
          %s335 = smul.addr %s334, 128
          %s336 = scalar_lea.hbm %s3, %s335
          %s337 = sshll.u32 %s325, 4
          %s338 = int_to_ptr.vmem [resolvable:$true] %s337
          %343 = dma.vmem_to_hbm [thread:$0]  %s338, 1024, %s336, %s322, 256, 256, 16
        $region36: #{conv1d_br.1} parent=31 // pred_fallthru
          _
      $region32: #{conv1d_br.1} parent=5 // pred_fallthru
        _
      %p344 = scmp.le.s32.totalorder 2, %s12
      // Predicated region
      $region37: #{conv1d_br.1} parent=5 // pred_check
        %p345 = pneg %p344
      $region38: #{conv1d_br.1} parent=5 // pred_check_branch
        %347 = sbr.rel (%p345) target = $region40
      $region39: #{conv1d_br.1} parent=5 // pred_region
        %s348 = ssub.s32 %s12, 2
        // Predicated region
        $region41: #{conv1d_br.1} parent=39 // pred_check
          %p349 = pneg %p125
        $region42: #{conv1d_br.1} parent=39 // pred_check_branch
          %351 = sbr.rel (%p349) target = $region44
        $region43: #{conv1d_br.1} parent=39 // pred_region
          %s352 = sand.u32 %s110, 1
          %s353 = scalar_lea.sflag [#allocation3], %s352
          %s354 = sand.u32 %s110, 1
          %s355 = smul.addr %s354, 64
          %s356 = scalar_lea.vmem [#allocation2], %s355
          %357 = dma.done %s353, 1024
        $region44: #{conv1d_br.1} parent=39 // pred_fallthru
          _
      $region40: #{conv1d_br.1} parent=5 // pred_fallthru
        _
    $region6: #{conv1d_br.1} parent=1 // loop_footer
      %s16 = sadd.s32 1, %s12
    $region7: #{conv1d_br.1} parent=1 // loop_footer_branch
      %11 = sbr.rel target = $region3
    $region8: #{conv1d_br.1} parent=1 // loop_exit
      _
    %358 = vsyncpa [#allocation3], 1
    %s359 = scalar_lea.sflag [#allocation3], 1
    %360 = vsyncpa %s359, 1

</llo_original>
